<compile_context>
chip_gen: v7x
topology: tpu7x:2x2x1
jax: 0.10.0
libtpu: 0.0.40
codegen_flags: <defaults>
</compile_context>

<pallas_src>
import jax
import jax.numpy as jnp
from jax.experimental import pallas as pl
from jax.experimental.pallas import tpu as pltpu

IN_FEATURES = 3
OUT_FEATURES = 30

# Batch tile for the large-B grid path. Multiple of 8. Lane-padded VMEM cost
# per tile: ~4 MiB (x) + ~4 MiB (out); double-buffered ~16 MiB -> fits the
# scoped default / raised limit on v5e, v6e, and v7x (64 MiB physical).
_BATCH_TILE = 8192
# Grid-less path covers everything up to 2 tiles; beyond that the grid has
# >= 3 steps, enough to amortize pipeline overhead and feed both v7x cores.
_SMALL_BATCH_MAX = 2 * _BATCH_TILE
# 48 MiB: leaves headroom on v7x (64 MiB VMEM/TC), well inside v5e/v6e 128 MiB.
_VMEM_LIMIT_BYTES = 48 * 1024 * 1024


def _linear_kernel(x_ref, wt_ref, b_ref, o_ref):
    # x_ref:  [B_tile, IN]   (f32)
    # wt_ref: [IN, OUT]      (f32, pre-transposed weight)
    # b_ref:  [1, OUT]       (f32)
    # o_ref:  [B_tile, OUT]  (f32)
    # Contraction on the MXU; K=3 / N=30 is tiny but it frees the VALU/XLU
    # slots that the broadcast-FMA path was saturating.
    y = jnp.dot(x_ref[...], wt_ref[...], preferred_element_type=jnp.float32)
    o_ref[...] = y + b_ref[...]


def prepare_params(weight, bias):
    """One-time parameter prep: transpose weight and reshape bias.

    weight: [OUT_FEATURES, IN_FEATURES] (PyTorch layout)
    bias:   [OUT_FEATURES]
    returns (wt [IN, OUT], bias2d [1, OUT]) in float32.
    """
    wt = jnp.asarray(weight, jnp.float32).T                       # [3, 30]
    bias2d = jnp.asarray(bias, jnp.float32).reshape(1, OUT_FEATURES)
    return wt, bias2d


def _cost_estimate(batch):
    # y = x @ wt + b : 2*B*K*N flops; bytes = x + out + params (f32).
    flops = 2 * batch * IN_FEATURES * OUT_FEATURES
    bytes_accessed = 4 * (
        batch * IN_FEATURES                 # x read
        + batch * OUT_FEATURES              # y write
        + IN_FEATURES * OUT_FEATURES        # weight
        + OUT_FEATURES                      # bias
    )
    return pl.CostEstimate(
        flops=flops, transcendentals=0, bytes_accessed=bytes_accessed
    )


def linear_forward(x, wt, bias2d):
    """Forward pass of Net: x @ W^T + b (with W pre-transposed to wt = W.T).

    x:      [B, IN_FEATURES]             float32
    wt:     [IN_FEATURES, OUT_FEATURES]  float32 (from prepare_params)
    bias2d: [1, OUT_FEATURES]            float32 (from prepare_params)
    returns [B, OUT_FEATURES]            float32
    """
    B = x.shape[0]
    out_shape = jax.ShapeDtypeStruct((B, OUT_FEATURES), jnp.float32)
    cost = _cost_estimate(B)

    if B <= _SMALL_BATCH_MAX:
        # Grid-less: single invocation, whole arrays resident in VMEM
        # (<= ~16 MiB lane-padded at B=16384). No pipeline machinery at all.
        vmem = pl.BlockSpec(memory_space=pltpu.MemorySpace.VMEM)
        return pl.pallas_call(
            _linear_kernel,
            out_shape=out_shape,
            in_specs=[vmem, vmem, vmem],
            out_specs=pl.BlockSpec(memory_space=pltpu.MemorySpace.VMEM),
            compiler_params=pltpu.CompilerParams(
                vmem_limit_bytes=_VMEM_LIMIT_BYTES
            ),
            cost_estimate=cost,
        )(x, wt, bias2d)

    # Large batch: tile the (independent) batch axis; "parallel" lets megacore
    # chips (v7x) shard the >=3 grid steps across both TensorCores.
    # Ragged last tile is safe: rows are independent and output writes are
    # clipped by Pallas; padded input rows produce discarded garbage.
    tm = _BATCH_TILE
    grid = (pl.cdiv(B, tm),)
    return pl.pallas_call(
        _linear_kernel,
        out_shape=out_shape,
        grid=grid,
        in_specs=[
            pl.BlockSpec((tm, IN_FEATURES), lambda i: (i, 0)),
            pl.BlockSpec((IN_FEATURES, OUT_FEATURES), lambda i: (0, 0)),
            pl.BlockSpec((1, OUT_FEATURES), lambda i: (0, 0)),
        ],
        out_specs=pl.BlockSpec((tm, OUT_FEATURES), lambda i: (i, 0)),
        compiler_params=pltpu.CompilerParams(
            dimension_semantics=("parallel",),
            vmem_limit_bytes=_VMEM_LIMIT_BYTES,
        ),
        cost_estimate=cost,
    )(x, wt, bias2d)


def init_params(key):
    # Matches Net.__init__: fc.weight ~ Normal(0, 0.1); bias keeps the PyTorch
    # Linear default init U(-1/sqrt(fan_in), 1/sqrt(fan_in)).
    kw, kb = jax.random.split(key)
    weight = 0.1 * jax.random.normal(kw, (OUT_FEATURES, IN_FEATURES), jnp.float32)
    bound = 1.0 / jnp.sqrt(IN_FEATURES)
    bias = jax.random.uniform(kb, (OUT_FEATURES,), jnp.float32,
                              minval=-bound, maxval=bound)
    return weight, bias


if __name__ == "__main__":
    key = jax.random.PRNGKey(0)
    k_x, k_p = jax.random.split(key)

    batch = 4
    x = jax.random.normal(k_x, (batch, IN_FEATURES), jnp.float32)
    weight, bias = init_params(k_p)

    # One-time parameter prep (outside the per-call path).
    wt, bias2d = prepare_params(weight, bias)

    out = linear_forward(x, wt, bias2d)
    jax.block_until_ready(out)

    # Sanity check against plain-JAX reference (PyTorch Linear semantics).
    ref = x @ weight.T + bias
    assert out.shape == (batch, OUT_FEATURES)
    assert jnp.allclose(out, ref, atol=1e-5, rtol=1e-5)

    print("KERNEL_OK")
</pallas_src>

<mosaic_0001>
module attributes {stable_mosaic.version = 11 : i64} {
  func.func @_linear_kernel(%arg0: memref<4x3xf32, #tpu.memory_space<vmem>>, %arg1: memref<3x30xf32, #tpu.memory_space<vmem>>, %arg2: memref<1x30xf32, #tpu.memory_space<vmem>>, %arg3: memref<4x30xf32, #tpu.memory_space<vmem>>) attributes {dimension_semantics = [], scalar_prefetch = 0 : i64, scratch_operands = 0 : i64, tpu.core_type = #tpu.core_type<tc>} {
    %c0 = arith.constant 0 : index
    %c0_0 = arith.constant 0 : index
    %0 = vector.load %arg0[%c0, %c0_0] : memref<4x3xf32, #tpu.memory_space<vmem>>, vector<4x3xf32>
    %c0_1 = arith.constant 0 : index
    %c0_2 = arith.constant 0 : index
    %1 = vector.load %arg1[%c0_1, %c0_2] : memref<3x30xf32, #tpu.memory_space<vmem>>, vector<3x30xf32>
    %cst = arith.constant dense<0.000000e+00> : vector<4x30xf32>
    %2 = tpu.matmul %0, %1, %cst {dimension_numbers = #tpu.dot_dimension_numbers<[1], [0], [0], [1], [0, 0, 1, 1], [], []>} : vector<4x3xf32>, vector<3x30xf32>, vector<4x30xf32> -> vector<4x30xf32>
    %c0_3 = arith.constant 0 : index
    %c0_4 = arith.constant 0 : index
    %3 = vector.load %arg2[%c0_3, %c0_4] : memref<1x30xf32, #tpu.memory_space<vmem>>, vector<1x30xf32>
    %4 = vector.broadcast %3 : vector<1x30xf32> to vector<4x30xf32>
    %5 = arith.addf %2, %4 : vector<4x30xf32>
    %c0_5 = arith.constant 0 : index
    %c0_6 = arith.constant 0 : index
    %6 = vector.load %arg3[%c0_5, %c0_6] : memref<4x30xf32, #tpu.memory_space<vmem>>, vector<4x30xf32>
    tpu.vector_store %arg3[%c0_5, %c0_6], %5 {strides = array<i32>} : memref<4x30xf32, #tpu.memory_space<vmem>>, vector<4x30xf32>,
    return
  }
}

</mosaic_0001>

<llo_original>
// kernel: tpu_custom_call.1
$region0: #{tpu_custom_call.1}
  #allocation0 [shape = 'u32[]', space=smem, size = 0x4, offset = 0x4, fixed_abs, tag = 'smem constant byte address 0x4 - core index']
  #allocation1 [shape = 'u32[144,128]{1,0:T(1,128)}', space=vmem, size = 0x12000, scoped, tag = 'internal scratch']
  %s0 = inlined_call_operand.hbm [shape: f32[4,3], index: 0, kind: input, shape index: {}]
  %s1 = inlined_call_operand.hbm [shape: f32[3,30], index: 1, kind: input, shape index: {}]
  %s2 = inlined_call_operand.vmem [shape: f32[1,30], index: 2, kind: input, shape index: {}]
  %s3 = inlined_call_operand.hbm [shape: f32[4,30], index: 3, kind: output, shape index: {}]
  %s4 = sld [smem:[#allocation0]]
  $region30: #{tpu_custom_call.1} parent=0
    _
  %s6 = ssub.s32 1, %s4
  %s7 = scalar_select 0, %s6, %s4
  $region1: #{tpu_custom_call.1} parent=0
    #allocation2 [shape = 'u8[2048]{0}', space=vmem, size = 0x800, scoped, tag = 'input window, operand 0, single buffered']
    #allocation3 [shape = 's32[1]{0}', space=sflag, size = 0x4, scoped, tag = 'scoped memory for tpu_custom_call.1']
    #allocation4 [shape = 's32[1]{0}', space=sflag, size = 0x4, scoped, tag = 'scoped memory for tpu_custom_call.1']
    #allocation5 [shape = 'u8[2048]{0}', space=vmem, size = 0x800, scoped, tag = 'input window, operand 1, single buffered']
    #allocation6 [shape = 's32[1]{0}', space=sflag, size = 0x4, scoped, tag = 'scoped memory for tpu_custom_call.1']
    #allocation7 [shape = 'u8[2048]{0}', space=vmem, size = 0x800, scoped, tag = 'output window, operand 0, single buffered']
    %8 = vsyncpa [#allocation3], 0
    %9 = vsyncpa [#allocation6], 0
    %10 = vsyncpa [#allocation4], 0
    // Predicated region
    $region2: #{tpu_custom_call.1} parent=1 // pred_check
      _
    $region3: #{tpu_custom_call.1} parent=1 // pred_check_branch
      %12 = sbr.rel (0) target = $region5
    $region4: #{tpu_custom_call.1} parent=1 // pred_region
      %s14 = ssub.s32 64, 64
      %15 = vsyncadd [#allocation3], %s14
      %s17 = sshll.u32 [#allocation2], 4
      %s18 = int_to_ptr.vmem [resolvable:$true] %s17
      %20 = dma.hbm_to_vmem [thread:$0]  %s0, 64, %s18, [#allocation3]
    $region5: #{tpu_custom_call.1} parent=1 // pred_fallthru
      _
    // Predicated region
    $region6: #{tpu_custom_call.1} parent=1 // pred_check
      _
    $region7: #{tpu_custom_call.1} parent=1 // pred_check_branch
      %22 = sbr.rel (0) target = $region9
    $region8: #{tpu_custom_call.1} parent=1 // pred_region
      %s24 = ssub.s32 64, 64
      %25 = vsyncadd [#allocation6], %s24
      %s27 = sshll.u32 [#allocation5], 4
      %s28 = int_to_ptr.vmem [resolvable:$true] %s27
      %30 = dma.hbm_to_vmem [thread:$0]  %s1, 64, %s28, [#allocation6]
    $region9: #{tpu_custom_call.1} parent=1 // pred_fallthru
      _
    // Predicated region
    $region10: #{tpu_custom_call.1} parent=1 // pred_check
      _
    $region11: #{tpu_custom_call.1} parent=1 // pred_check_branch
      %32 = sbr.rel (0) target = $region13
    $region12: #{tpu_custom_call.1} parent=1 // pred_region
      _
    $region13: #{tpu_custom_call.1} parent=1 // pred_fallthru
      _
    // Predicated region
    $region14: #{tpu_custom_call.1} parent=1 // pred_check
      _
    $region15: #{tpu_custom_call.1} parent=1 // pred_check_branch
      %34 = sbr.rel (0) target = $region17
    $region16: #{tpu_custom_call.1} parent=1 // pred_region
      %35 = dma.done [#allocation3], 64
    $region17: #{tpu_custom_call.1} parent=1 // pred_fallthru
      _
    // Predicated region
    $region18: #{tpu_custom_call.1} parent=1 // pred_check
      _
    $region19: #{tpu_custom_call.1} parent=1 // pred_check_branch
      %37 = sbr.rel (0) target = $region21
    $region20: #{tpu_custom_call.1} parent=1 // pred_region
      %38 = dma.done [#allocation6], 64
    $region21: #{tpu_custom_call.1} parent=1 // pred_fallthru
      _
    %v39 = vld [vmem:[#allocation2] sm:$0xf]
    %v40 = vld [vmem:[#allocation5] sm:$0x7]
    %v41 = vld [vmem:[%s2] sm:$0x1]
    %v43 = vlaneseq
    %v44 = vshrl.u32 %v43, 7
    %v45 = vsub.s32 0, %v44
    %v46 = vrot.slane %v41, %v45
    %vm48 = vcmask 23552
    %v50 = vsel %vm48, %v39, 0
    %vm52 = vcmask 1042432
    %v54 = vsel %vm52, %v40, 0
    %56 = vmatprep.subr.mxu0 0.0
    %57 = vmatpush1.msra.mxu0 %v54
    %58 = vmatprep.subr.mxu0 0.0
    %59 = vmatpush1.msra.mxu0 0.0
    %60 = vmatprep.subr.mxu0 0.0
    %61 = vmatpush1.msra.mxu0 0.0
    %62 = vmatprep.subr.mxu0 0.0
    %63 = vmatpush1.msra.mxu0 0.0
    %64 = vmatprep.subr.mxu0 0.0
    %65 = vmatpush1.msra.mxu0 0.0
    %66 = vmatprep.subr.mxu0 0.0
    %67 = vmatpush1.msra.mxu0 0.0
    %68 = vmatprep.subr.mxu0 0.0
    %69 = vmatpush1.msra.mxu0 0.0
    %70 = vmatprep.subr.mxu0 0.0
    %71 = vmatpush1.msra.mxu0 0.0
    %72 = vmatprep.subr.mxu0 0.0
    %73 = vmatpush1.msra.mxu0 0.0
    %74 = vmatprep.subr.mxu0 0.0
    %75 = vmatpush1.msra.mxu0 0.0
    %76 = vmatprep.subr.mxu0 0.0
    %77 = vmatpush1.msra.mxu0 0.0
    %78 = vmatprep.subr.mxu0 0.0
    %79 = vmatpush1.msra.mxu0 0.0
    %80 = vmatprep.subr.mxu0 0.0
    %81 = vmatpush1.msra.mxu0 0.0
    %82 = vmatprep.subr.mxu0 0.0
    %83 = vmatpush1.msra.mxu0 0.0
    %84 = vmatprep.subr.mxu0 0.0
    %85 = vmatpush1.msra.mxu0 0.0
    %86 = vmatprep.subr.mxu0 0.0
    %87 = vmatpush1.msra.mxu0 0.0
    %88 = vmatprep.subr.mxu0 0.0
    %89 = vmatpush1.msra.mxu0 0.0
    %90 = vmatprep.subr.mxu0 0.0
    %91 = vmatpush1.msra.mxu0 0.0
    %92 = vmatprep.subr.mxu0 0.0
    %93 = vmatpush1.msra.mxu0 0.0
    %94 = vmatprep.subr.mxu0 0.0
    %95 = vmatpush1.msra.mxu0 0.0
    %96 = vmatprep.subr.mxu0 0.0
    %97 = vmatpush1.msra.mxu0 0.0
    %98 = vmatprep.subr.mxu0 0.0
    %99 = vmatpush1.msra.mxu0 0.0
    %100 = vmatprep.subr.mxu0 0.0
    %101 = vmatpush1.msra.mxu0 0.0
    %102 = vmatprep.subr.mxu0 0.0
    %103 = vmatpush1.msra.mxu0 0.0
    %104 = vmatprep.subr.mxu0 0.0
    %105 = vmatpush1.msra.mxu0 0.0
    %106 = vmatprep.subr.mxu0 0.0
    %107 = vmatpush1.msra.mxu0 0.0
    %108 = vmatprep.subr.mxu0 0.0
    %109 = vmatpush1.msra.mxu0 0.0
    %110 = vmatprep.subr.mxu0 0.0
    %111 = vmatpush1.msra.mxu0 0.0
    %112 = vmatprep.subr.mxu0 0.0
    %113 = vmatpush1.msra.mxu0 0.0
    %114 = vmatprep.subr.mxu0 0.0
    %115 = vmatpush1.msra.mxu0 0.0
    %116 = vmatprep.subr.mxu0 0.0
    %117 = vmatpush1.msra.mxu0 0.0
    %118 = vmatprep.subr.mxu0 0.0
    %119 = vmatpush1.msra.mxu0 0.0
    %120 = vmatprep.mubr.f32.mxu0 0.0
    %121 = vmatmul.mubr.f32.gmra.mrb[0].mxu0 %v50
    %v122 = vpop.f32.mrb[0].mxu0
    %v123 = vadd.f32 %v46, %v122
    %v124 = vpop.f32.mrb[0].mxu0
    %125 = vdwg.mxu0
    %vm126 = vcmask 240640
    %127 = vst.msk [vmem:[#allocation7] sm:$0xf] %vm126, %v123
    // Predicated region
    $region22: #{tpu_custom_call.1} parent=1 // pred_check
      _
    $region23: #{tpu_custom_call.1} parent=1 // pred_check_branch
      %129 = sbr.rel (0) target = $region25
    $region24: #{tpu_custom_call.1} parent=1 // pred_region
      %s131 = ssub.s32 64, 64
      %132 = vsyncadd [#allocation4], %s131
      %s134 = sshll.u32 [#allocation7], 4
      %s135 = int_to_ptr.vmem [resolvable:$true] %s134
      %137 = dma.vmem_to_hbm [thread:$0]  %s135, 64, %s3, [#allocation4]
    $region25: #{tpu_custom_call.1} parent=1 // pred_fallthru
      _
    // Predicated region
    $region26: #{tpu_custom_call.1} parent=1 // pred_check
      _
    $region27: #{tpu_custom_call.1} parent=1 // pred_check_branch
      %139 = sbr.rel (0) target = $region29
    $region28: #{tpu_custom_call.1} parent=1 // pred_region
      %140 = dma.done [#allocation4], 64
    $region29: #{tpu_custom_call.1} parent=1 // pred_fallthru
      _
    %141 = vsyncpa [#allocation3], 1
    %142 = vsyncpa [#allocation6], 1
    %143 = vsyncpa [#allocation4], 1

</llo_original>
